<compile_context>
chip_gen: v5e
topology: v5e:2x2
jax: 0.10.0
libtpu: 0.0.40
codegen_flags: <defaults>
</compile_context>

<pallas_src>
import jax
import jax.numpy as jnp
from jax import lax
from jax.experimental import pallas as pl
from jax.experimental.pallas import tpu as pltpu

FEAT_DIM = 32    # "maps" in the module (fc outputs maps*2 = 64)
GRADE = 5
LABEL_DIM = 2    # (pitch, yaw) gaze label
NEG = -1e30      # finite sentinel for the masked diagonal (keep finite: 0*NEG == 0)


def align_loss_kernel(f_row_ref, lab_row_ref, fat_ref, labt_ref, t1_ref, t2_ref,
                      loss_ref, acc_ref):
    i = pl.program_id(0)
    nt = pl.num_programs(0)

    f_row = f_row_ref[...]        # (tn, C)  row tile of features
    lab_row = lab_row_ref[...]    # (tn, L)  row tile of labels
    f_all_t = fat_ref[...]        # (C, N)   all features, transposed (lane-dense cols)
    lab_all_t = labt_ref[...]     # (L, N)   all labels, transposed
    t1 = t1_ref[...]              # (G, C)   first half of fc(text)
    t2 = t2_ref[...]              # (G, C)   second half of fc(text)

    tn, c = f_row.shape
    n = f_all_t.shape[1]
    g_n = t1.shape[0]

    # 1 / ||t_g|| over the full 2C text vector, (G, 1)
    tsq = (jnp.sum(t1 * t1, axis=-1, keepdims=True)
           + jnp.sum(t2 * t2, axis=-1, keepdims=True))
    inv_t = lax.rsqrt(tsq)                                            # (G, 1)

    # MXU: row-tile projection and full-column projection (no feature transpose)
    dot1 = lax.dot_general(f_row, t1, (((1,), (1,)), ((), ())),
                           preferred_element_type=jnp.float32)        # (tn, G)
    dot2 = jnp.dot(t2, f_all_t, preferred_element_type=jnp.float32)   # (G, N)
    dot2 = dot2 * inv_t                                               # fold 1/||t_g||

    # 1 / ||concat(f_i, f_j)|| = rsqrt(||f_i||^2 + ||f_j||^2)
    fn2_col = jnp.sum(f_row * f_row, axis=-1, keepdims=True)          # (tn, 1)
    fn2_row = jnp.sum(f_all_t * f_all_t, axis=0, keepdims=True)       # (1, N)
    inv_pair = lax.rsqrt(fn2_col + fn2_row)                           # (tn, N)

    # pairwise L1 label distance  sum_l |lab_i[l] - lab_j[l]|
    n_lab = lab_row.shape[1]
    ldiff = jnp.abs(lab_row[:, 0:1] - lab_all_t[0:1, :])
    for di in range(1, n_lab):
        ldiff = ldiff + jnp.abs(lab_row[:, di:di + 1] - lab_all_t[di:di + 1, :])

    # off-diagonal mask in global coordinates for this row tile
    row_g = lax.broadcasted_iota(jnp.int32, (tn, n), 0) + i * tn
    col_g = lax.broadcasted_iota(jnp.int32, (tn, n), 1)
    off = row_g != col_g

    # single int bucket array instead of 5 boolean masks; diagonal -> -1
    bucket = ((ldiff >= 0.1).astype(jnp.int32)
              + (ldiff >= 0.2).astype(jnp.int32)
              + (ldiff >= 0.3).astype(jnp.int32)
              + (ldiff >= 0.5).astype(jnp.int32))
    bucket = jnp.where(off, bucket, -1)

    neg = jnp.float32(NEG)
    ce_col = jnp.zeros((tn, 1), jnp.float32)
    for g in range(g_n):
        # cosine similarity of concat(f_i, f_j) with text vector t_g
        col = dot1[:, g:g + 1] * inv_t[g:g + 1, 0:1]                  # (tn, 1)
        num = col + dot2[g:g + 1, :]                                  # (tn, N)
        logits = jnp.where(off, num * inv_pair, neg)

        # soft-target CE without materializing log-softmax
        mx = jnp.max(logits, axis=-1, keepdims=True)                  # (tn, 1)
        shifted = logits - mx
        sumexp = jnp.sum(jnp.exp(shifted), axis=-1, keepdims=True)    # (tn, 1)
        tgt = (bucket == g).astype(jnp.float32)
        ce_col = ce_col + (jnp.sum(tgt, axis=-1, keepdims=True) * jnp.log(sumexp)
                           - jnp.sum(tgt * shifted, axis=-1, keepdims=True))

    tile_sum = jnp.sum(ce_col)

    @pl.when(i == 0)
    def _():
        acc_ref[0] = jnp.float32(0.0)

    acc_ref[0] += tile_sum

    @pl.when(i == nt - 1)
    def _():
        # loss = (sum_g mean_rows CE_g) / G * 32 / n  =  sum(CE) * 32 / (G*n*n)
        loss_ref[0, 0] = acc_ref[0] * jnp.float32(32.0 / (GRADE * n * n))


def align_loss(features, labels, text_norm, fc_w, fc_b, tile_n=None):
    n, c = features.shape
    n_lab = labels.shape[1]

    # Hoisted fc projection (the 256 KiB weight read stays out of the kernel).
    t = jnp.dot(text_norm, fc_w, preferred_element_type=jnp.float32) + fc_b  # (G, 2C)
    t1 = t[:, :c]
    t2 = t[:, c:]
    g_n = t.shape[0]

    # Lane-dense column operands (transposed in XLA, not inside the kernel).
    feats_t = features.T       # (C, n)
    labels_t = labels.T        # (L, n)

    if tile_n is None:
        tile_n = 128 if (n % 128 == 0) else n
    assert n % tile_n == 0, "row tile must divide n"
    grid = (n // tile_n,)

    out = pl.pallas_call(
        align_loss_kernel,
        out_shape=jax.ShapeDtypeStruct((1, 1), jnp.float32),
        grid=grid,
        in_specs=[
            pl.BlockSpec((tile_n, c), lambda i: (i, 0)),        # feature row tile
            pl.BlockSpec((tile_n, n_lab), lambda i: (i, 0)),    # label row tile
            pl.BlockSpec((c, n), lambda i: (0, 0)),             # features.T (resident)
            pl.BlockSpec((n_lab, n), lambda i: (0, 0)),         # labels.T (resident)
            pl.BlockSpec((g_n, c), lambda i: (0, 0)),           # t1
            pl.BlockSpec((g_n, c), lambda i: (0, 0)),           # t2
        ],
        out_specs=pl.BlockSpec((1, 1), lambda i: (0, 0),
                               memory_space=pltpu.MemorySpace.SMEM),
        scratch_shapes=[pltpu.SMEM((1,), jnp.float32)],
        compiler_params=pltpu.CompilerParams(
            dimension_semantics=("arbitrary",),     # sequential CE accumulation
            vmem_limit_bytes=32 * 1024 * 1024,
        ),
    )(features, labels, feats_t, labels_t, t1, t2)
    return out[0, 0]


def align_loss_ref(features, labels, text_norm, fc_w, fc_b):
    """Pure-JAX reference mirroring the PyTorch forward (eager, small n)."""
    n, c = features.shape
    t = text_norm @ fc_w + fc_b                                    # (G, 2C)
    exp1 = jnp.broadcast_to(features[:, None, :], (n, n, c))
    exp2 = jnp.broadcast_to(features[None, :, :], (n, n, c))
    fd = jnp.concatenate([exp1, exp2], axis=2)                     # (n, n, 2C)
    offmask = ~jnp.eye(n, dtype=bool)
    fd = fd[offmask].reshape(n, n - 1, 2 * c)                      # masked_select
    ld = jnp.sum(jnp.abs(labels[:, None, :] - labels[None, :, :]), axis=-1)
    ld = ld[offmask].reshape(n, n - 1)
    masks = [
        (ld < 0.1),
        (ld < 0.2) & (ld >= 0.1),
        (ld < 0.3) & (ld >= 0.2),
        (ld < 0.5) & (ld >= 0.3),
        (ld >= 0.5),
    ]
    loss = 0.0
    for g in range(GRADE):
        tv = t[g]
        num = jnp.sum(fd * tv, axis=-1)
        den = jnp.maximum(jnp.linalg.norm(fd, axis=-1) * jnp.linalg.norm(tv), 1e-8)
        logits = num / den
        logsm = jax.nn.log_softmax(logits, axis=-1)
        tgt = masks[g].astype(jnp.float32)
        loss = loss + jnp.mean(-jnp.sum(tgt * logsm, axis=-1))
    return loss / GRADE * 32.0 / n


if __name__ == "__main__":
    key = jax.random.PRNGKey(0)
    k1, k2, k3, k4, k5 = jax.random.split(key, 5)
    n = 8

    features = jax.random.normal(k1, (n, FEAT_DIM), jnp.float32)
    labels = jax.random.uniform(k2, (n, LABEL_DIM), jnp.float32)

    # deterministic stand-in for CLIP encode_text output, L2-normalized
    text_raw = jax.random.normal(k3, (GRADE, 1024), jnp.float32)
    text_norm = text_raw / jnp.linalg.norm(text_raw, axis=-1, keepdims=True)

    # deterministic nn.Linear(1024, 2*FEAT_DIM) parameters
    fc_w = jax.random.normal(k4, (1024, 2 * FEAT_DIM), jnp.float32) / jnp.sqrt(1024.0)
    fc_b = jax.random.normal(k5, (1, 2 * FEAT_DIM), jnp.float32) * 0.01

    loss = align_loss(features, labels, text_norm, fc_w, fc_b)
    loss = jax.block_until_ready(loss)

    ref = align_loss_ref(features, labels, text_norm, fc_w, fc_b)
    assert jnp.allclose(loss, ref, rtol=1e-3, atol=1e-3), (float(loss), float(ref))
    print("KERNEL_OK")
</pallas_src>

<mosaic_0001>
module attributes {stable_mosaic.version = 11 : i64} {
  func.func @align_loss_kernel(%arg0: i32, %arg1: memref<8x32xf32, #tpu.memory_space<vmem>>, %arg2: memref<8x2xf32, #tpu.memory_space<vmem>>, %arg3: memref<32x8xf32, #tpu.memory_space<vmem>>, %arg4: memref<2x8xf32, #tpu.memory_space<vmem>>, %arg5: memref<5x32xf32, #tpu.memory_space<vmem>>, %arg6: memref<5x32xf32, #tpu.memory_space<vmem>>, %arg7: memref<1x1xf32, #tpu.memory_space<smem>>, %arg8: memref<1xf32, #tpu.memory_space<smem>>) attributes {dimension_semantics = [#tpu.dimension_semantics<arbitrary>], iteration_bounds = array<i64: 1>, scalar_prefetch = 0 : i64, scratch_operands = 1 : i64, tpu.core_type = #tpu.core_type<tc>, window_params = [{transform_indices = @transform_0, window_bounds = array<i64: 8, 32>}, {transform_indices = @transform_1, window_bounds = array<i64: 8, 2>}, {pipeline_mode = #tpu.pipeline_mode<synchronous>, transform_indices = @transform_2, window_bounds = array<i64: 32, 8>}, {pipeline_mode = #tpu.pipeline_mode<synchronous>, transform_indices = @transform_3, window_bounds = array<i64: 2, 8>}, {pipeline_mode = #tpu.pipeline_mode<synchronous>, transform_indices = @transform_4, window_bounds = array<i64: 5, 32>}, {pipeline_mode = #tpu.pipeline_mode<synchronous>, transform_indices = @transform_5, window_bounds = array<i64: 5, 32>}, {transform_indices = @transform_6, window_bounds = array<i64: 1, 1>}]} {
    %c0 = arith.constant 0 : index
    %c0_0 = arith.constant 0 : index
    %0 = vector.load %arg1[%c0, %c0_0] : memref<8x32xf32, #tpu.memory_space<vmem>>, vector<8x32xf32>
    %c0_1 = arith.constant 0 : index
    %c0_2 = arith.constant 0 : index
    %1 = vector.load %arg2[%c0_1, %c0_2] : memref<8x2xf32, #tpu.memory_space<vmem>>, vector<8x2xf32>
    %c0_3 = arith.constant 0 : index
    %c0_4 = arith.constant 0 : index
    %2 = vector.load %arg3[%c0_3, %c0_4] : memref<32x8xf32, #tpu.memory_space<vmem>>, vector<32x8xf32>
    %c0_5 = arith.constant 0 : index
    %c0_6 = arith.constant 0 : index
    %3 = vector.load %arg4[%c0_5, %c0_6] : memref<2x8xf32, #tpu.memory_space<vmem>>, vector<2x8xf32>
    %c0_7 = arith.constant 0 : index
    %c0_8 = arith.constant 0 : index
    %4 = vector.load %arg5[%c0_7, %c0_8] : memref<5x32xf32, #tpu.memory_space<vmem>>, vector<5x32xf32>
    %c0_9 = arith.constant 0 : index
    %c0_10 = arith.constant 0 : index
    %5 = vector.load %arg6[%c0_9, %c0_10] : memref<5x32xf32, #tpu.memory_space<vmem>>, vector<5x32xf32>
    %6 = arith.mulf %4, %4 : vector<5x32xf32>
    %cst = arith.constant dense<0.000000e+00> : vector<5xf32>
    %7 = vector.multi_reduction <add>, %6, %cst [1] : vector<5x32xf32> to vector<5xf32>
    %8 = vector.shape_cast %7 : vector<5xf32> to vector<5x1xf32>
    %9 = arith.mulf %5, %5 : vector<5x32xf32>
    %cst_11 = arith.constant dense<0.000000e+00> : vector<5xf32>
    %10 = vector.multi_reduction <add>, %9, %cst_11 [1] : vector<5x32xf32> to vector<5xf32>
    %11 = vector.shape_cast %10 : vector<5xf32> to vector<5x1xf32>
    %12 = arith.addf %8, %11 : vector<5x1xf32>
    %13 = math.rsqrt %12 : vector<5x1xf32>
    %cst_12 = arith.constant dense<0.000000e+00> : vector<8x5xf32>
    %14 = tpu.matmul %0, %4, %cst_12 {dimension_numbers = #tpu.dot_dimension_numbers<[1], [1], [0], [0], [0, 0, 1, 0], [], []>} : vector<8x32xf32>, vector<5x32xf32>, vector<8x5xf32> -> vector<8x5xf32>
    %cst_13 = arith.constant dense<0.000000e+00> : vector<5x8xf32>
    %15 = tpu.matmul %5, %2, %cst_13 {dimension_numbers = #tpu.dot_dimension_numbers<[1], [0], [0], [1], [0, 0, 1, 1], [], []>} : vector<5x32xf32>, vector<32x8xf32>, vector<5x8xf32> -> vector<5x8xf32>
    %16 = vector.broadcast %13 : vector<5x1xf32> to vector<5x8xf32>
    %17 = arith.mulf %15, %16 : vector<5x8xf32>
    %18 = arith.mulf %0, %0 : vector<8x32xf32>
    %cst_14 = arith.constant dense<0.000000e+00> : vector<8xf32>
    %19 = vector.multi_reduction <add>, %18, %cst_14 [1] : vector<8x32xf32> to vector<8xf32>
    %20 = vector.shape_cast %19 : vector<8xf32> to vector<8x1xf32>
    %21 = arith.mulf %2, %2 : vector<32x8xf32>
    %cst_15 = arith.constant dense<0.000000e+00> : vector<8xf32>
    %22 = vector.multi_reduction <add>, %21, %cst_15 [0] : vector<32x8xf32> to vector<8xf32>
    %23 = vector.shape_cast %22 : vector<8xf32> to vector<1x8xf32>
    %24 = vector.broadcast %20 : vector<8x1xf32> to vector<8x8xf32>
    %25 = vector.broadcast %23 : vector<1x8xf32> to vector<8x8xf32>
    %26 = arith.addf %24, %25 : vector<8x8xf32>
    %27 = math.rsqrt %26 : vector<8x8xf32>
    %28 = vector.extract_strided_slice %1 {offsets = [0, 0], sizes = [8, 1], strides = [1, 1]} : vector<8x2xf32> to vector<8x1xf32>
    %29 = vector.extract_strided_slice %3 {offsets = [0, 0], sizes = [1, 8], strides = [1, 1]} : vector<2x8xf32> to vector<1x8xf32>
    %30 = vector.broadcast %28 : vector<8x1xf32> to vector<8x8xf32>
    %31 = vector.broadcast %29 : vector<1x8xf32> to vector<8x8xf32>
    %32 = arith.subf %30, %31 : vector<8x8xf32>
    %33 = math.absf %32 : vector<8x8xf32>
    %34 = vector.extract_strided_slice %1 {offsets = [0, 1], sizes = [8, 1], strides = [1, 1]} : vector<8x2xf32> to vector<8x1xf32>
    %35 = vector.extract_strided_slice %3 {offsets = [1, 0], sizes = [1, 8], strides = [1, 1]} : vector<2x8xf32> to vector<1x8xf32>
    %36 = vector.broadcast %34 : vector<8x1xf32> to vector<8x8xf32>
    %37 = vector.broadcast %35 : vector<1x8xf32> to vector<8x8xf32>
    %38 = arith.subf %36, %37 : vector<8x8xf32>
    %39 = math.absf %38 : vector<8x8xf32>
    %40 = arith.addf %33, %39 : vector<8x8xf32>
    %41 = tpu.iota {dimensions = array<i32: 0>} : vector<8x8xi32>
    %c8_i32 = arith.constant 8 : i32
    %42 = arith.muli %arg0, %c8_i32 : i32
    %43 = vector.broadcast %42 : i32 to vector<8x8xi32>
    %44 = arith.addi %41, %43 : vector<8x8xi32>
    %45 = tpu.iota {dimensions = array<i32: 1>} : vector<8x8xi32>
    %46 = arith.cmpi ne, %44, %45 : vector<8x8xi32>
    %cst_16 = arith.constant 1.000000e-01 : f32
    %47 = vector.broadcast %cst_16 : f32 to vector<8x8xf32>
    %48 = arith.cmpf oge, %40, %47 : vector<8x8xf32>
    %49 = arith.extui %48 : vector<8x8xi1> to vector<8x8xi32>
    %cst_17 = arith.constant 2.000000e-01 : f32
    %50 = vector.broadcast %cst_17 : f32 to vector<8x8xf32>
    %51 = arith.cmpf oge, %40, %50 : vector<8x8xf32>
    %52 = arith.extui %51 : vector<8x8xi1> to vector<8x8xi32>
    %53 = arith.addi %49, %52 : vector<8x8xi32>
    %cst_18 = arith.constant 3.000000e-01 : f32
    %54 = vector.broadcast %cst_18 : f32 to vector<8x8xf32>
    %55 = arith.cmpf oge, %40, %54 : vector<8x8xf32>
    %56 = arith.extui %55 : vector<8x8xi1> to vector<8x8xi32>
    %57 = arith.addi %53, %56 : vector<8x8xi32>
    %cst_19 = arith.constant 5.000000e-01 : f32
    %58 = vector.broadcast %cst_19 : f32 to vector<8x8xf32>
    %59 = arith.cmpf oge, %40, %58 : vector<8x8xf32>
    %60 = arith.extui %59 : vector<8x8xi1> to vector<8x8xi32>
    %61 = arith.addi %57, %60 : vector<8x8xi32>
    %c-1_i32 = arith.constant -1 : i32
    %62 = vector.broadcast %c-1_i32 : i32 to vector<8x8xi32>
    %63 = arith.select %46, %61, %62 : vector<8x8xi1>, vector<8x8xi32>
    %cst_20 = arith.constant 0.000000e+00 : f32
    %64 = vector.broadcast %cst_20 : f32 to vector<8x1xf32>
    %65 = vector.extract_strided_slice %14 {offsets = [0, 0], sizes = [8, 1], strides = [1, 1]} : vector<8x5xf32> to vector<8x1xf32>
    %66 = vector.extract_strided_slice %13 {offsets = [0, 0], sizes = [1, 1], strides = [1, 1]} : vector<5x1xf32> to vector<1x1xf32>
    %67 = vector.broadcast %66 : vector<1x1xf32> to vector<8x1xf32>
    %68 = arith.mulf %65, %67 : vector<8x1xf32>
    %69 = vector.extract_strided_slice %17 {offsets = [0, 0], sizes = [1, 8], strides = [1, 1]} : vector<5x8xf32> to vector<1x8xf32>
    %70 = vector.broadcast %68 : vector<8x1xf32> to vector<8x8xf32>
    %71 = vector.broadcast %69 : vector<1x8xf32> to vector<8x8xf32>
    %72 = arith.addf %70, %71 : vector<8x8xf32>
    %73 = arith.mulf %72, %27 : vector<8x8xf32>
    %cst_21 = arith.constant -1.000000e+30 : f32
    %74 = vector.broadcast %cst_21 : f32 to vector<8x8xf32>
    %75 = arith.select %46, %73, %74 : vector<8x8xi1>, vector<8x8xf32>
    %cst_22 = arith.constant dense<0xFF800000> : vector<8xf32>
    %76 = vector.multi_reduction <maximumf>, %75, %cst_22 [1] : vector<8x8xf32> to vector<8xf32>
    %77 = vector.shape_cast %76 : vector<8xf32> to vector<8x1xf32>
    %78 = vector.broadcast %77 : vector<8x1xf32> to vector<8x8xf32>
    %79 = arith.subf %75, %78 : vector<8x8xf32>
    %80 = math.exp %79 : vector<8x8xf32>
    %cst_23 = arith.constant dense<0.000000e+00> : vector<8xf32>
    %81 = vector.multi_reduction <add>, %80, %cst_23 [1] : vector<8x8xf32> to vector<8xf32>
    %82 = vector.shape_cast %81 : vector<8xf32> to vector<8x1xf32>
    %c0_i32 = arith.constant 0 : i32
    %83 = vector.broadcast %c0_i32 : i32 to vector<8x8xi32>
    %84 = arith.cmpi eq, %63, %83 : vector<8x8xi32>
    %85 = arith.extui %84 : vector<8x8xi1> to vector<8x8xi32>
    %86 = arith.sitofp %85 : vector<8x8xi32> to vector<8x8xf32>
    %cst_24 = arith.constant dense<0.000000e+00> : vector<8xf32>
    %87 = vector.multi_reduction <add>, %86, %cst_24 [1] : vector<8x8xf32> to vector<8xf32>
    %88 = vector.shape_cast %87 : vector<8xf32> to vector<8x1xf32>
    %89 = math.log %82 : vector<8x1xf32>
    %90 = arith.mulf %88, %89 : vector<8x1xf32>
    %91 = arith.mulf %86, %79 : vector<8x8xf32>
    %cst_25 = arith.constant dense<0.000000e+00> : vector<8xf32>
    %92 = vector.multi_reduction <add>, %91, %cst_25 [1] : vector<8x8xf32> to vector<8xf32>
    %93 = vector.shape_cast %92 : vector<8xf32> to vector<8x1xf32>
    %94 = arith.subf %90, %93 : vector<8x1xf32>
    %95 = arith.addf %64, %94 : vector<8x1xf32>
    %96 = vector.extract_strided_slice %14 {offsets = [0, 1], sizes = [8, 1], strides = [1, 1]} : vector<8x5xf32> to vector<8x1xf32>
    %97 = vector.extract_strided_slice %13 {offsets = [1, 0], sizes = [1, 1], strides = [1, 1]} : vector<5x1xf32> to vector<1x1xf32>
    %98 = vector.broadcast %97 : vector<1x1xf32> to vector<8x1xf32>
    %99 = arith.mulf %96, %98 : vector<8x1xf32>
    %100 = vector.extract_strided_slice %17 {offsets = [1, 0], sizes = [1, 8], strides = [1, 1]} : vector<5x8xf32> to vector<1x8xf32>
    %101 = vector.broadcast %99 : vector<8x1xf32> to vector<8x8xf32>
    %102 = vector.broadcast %100 : vector<1x8xf32> to vector<8x8xf32>
    %103 = arith.addf %101, %102 : vector<8x8xf32>
    %104 = arith.mulf %103, %27 : vector<8x8xf32>
    %cst_26 = arith.constant -1.000000e+30 : f32
    %105 = vector.broadcast %cst_26 : f32 to vector<8x8xf32>
    %106 = arith.select %46, %104, %105 : vector<8x8xi1>, vector<8x8xf32>
    %cst_27 = arith.constant dense<0xFF800000> : vector<8xf32>
    %107 = vector.multi_reduction <maximumf>, %106, %cst_27 [1] : vector<8x8xf32> to vector<8xf32>
    %108 = vector.shape_cast %107 : vector<8xf32> to vector<8x1xf32>
    %109 = vector.broadcast %108 : vector<8x1xf32> to vector<8x8xf32>
    %110 = arith.subf %106, %109 : vector<8x8xf32>
    %111 = math.exp %110 : vector<8x8xf32>
    %cst_28 = arith.constant dense<0.000000e+00> : vector<8xf32>
    %112 = vector.multi_reduction <add>, %111, %cst_28 [1] : vector<8x8xf32> to vector<8xf32>
    %113 = vector.shape_cast %112 : vector<8xf32> to vector<8x1xf32>
    %c1_i32 = arith.constant 1 : i32
    %114 = vector.broadcast %c1_i32 : i32 to vector<8x8xi32>
    %115 = arith.cmpi eq, %63, %114 : vector<8x8xi32>
    %116 = arith.extui %115 : vector<8x8xi1> to vector<8x8xi32>
    %117 = arith.sitofp %116 : vector<8x8xi32> to vector<8x8xf32>
    %cst_29 = arith.constant dense<0.000000e+00> : vector<8xf32>
    %118 = vector.multi_reduction <add>, %117, %cst_29 [1] : vector<8x8xf32> to vector<8xf32>
    %119 = vector.shape_cast %118 : vector<8xf32> to vector<8x1xf32>
    %120 = math.log %113 : vector<8x1xf32>
    %121 = arith.mulf %119, %120 : vector<8x1xf32>
    %122 = arith.mulf %117, %110 : vector<8x8xf32>
    %cst_30 = arith.constant dense<0.000000e+00> : vector<8xf32>
    %123 = vector.multi_reduction <add>, %122, %cst_30 [1] : vector<8x8xf32> to vector<8xf32>
    %124 = vector.shape_cast %123 : vector<8xf32> to vector<8x1xf32>
    %125 = arith.subf %121, %124 : vector<8x1xf32>
    %126 = arith.addf %95, %125 : vector<8x1xf32>
    %127 = vector.extract_strided_slice %14 {offsets = [0, 2], sizes = [8, 1], strides = [1, 1]} : vector<8x5xf32> to vector<8x1xf32>
    %128 = vector.extract_strided_slice %13 {offsets = [2, 0], sizes = [1, 1], strides = [1, 1]} : vector<5x1xf32> to vector<1x1xf32>
    %129 = vector.broadcast %128 : vector<1x1xf32> to vector<8x1xf32>
    %130 = arith.mulf %127, %129 : vector<8x1xf32>
    %131 = vector.extract_strided_slice %17 {offsets = [2, 0], sizes = [1, 8], strides = [1, 1]} : vector<5x8xf32> to vector<1x8xf32>
    %132 = vector.broadcast %130 : vector<8x1xf32> to vector<8x8xf32>
    %133 = vector.broadcast %131 : vector<1x8xf32> to vector<8x8xf32>
    %134 = arith.addf %132, %133 : vector<8x8xf32>
    %135 = arith.mulf %134, %27 : vector<8x8xf32>
    %cst_31 = arith.constant -1.000000e+30 : f32
    %136 = vector.broadcast %cst_31 : f32 to vector<8x8xf32>
    %137 = arith.select %46, %135, %136 : vector<8x8xi1>, vector<8x8xf32>
    %cst_32 = arith.constant dense<0xFF800000> : vector<8xf32>
    %138 = vector.multi_reduction <maximumf>, %137, %cst_32 [1] : vector<8x8xf32> to vector<8xf32>
    %139 = vector.shape_cast %138 : vector<8xf32> to vector<8x1xf32>
    %140 = vector.broadcast %139 : vector<8x1xf32> to vector<8x8xf32>
    %141 = arith.subf %137, %140 : vector<8x8xf32>
    %142 = math.exp %141 : vector<8x8xf32>
    %cst_33 = arith.constant dense<0.000000e+00> : vector<8xf32>
    %143 = vector.multi_reduction <add>, %142, %cst_33 [1] : vector<8x8xf32> to vector<8xf32>
    %144 = vector.shape_cast %143 : vector<8xf32> to vector<8x1xf32>
    %c2_i32 = arith.constant 2 : i32
    %145 = vector.broadcast %c2_i32 : i32 to vector<8x8xi32>
    %146 = arith.cmpi eq, %63, %145 : vector<8x8xi32>
    %147 = arith.extui %146 : vector<8x8xi1> to vector<8x8xi32>
    %148 = arith.sitofp %147 : vector<8x8xi32> to vector<8x8xf32>
    %cst_34 = arith.constant dense<0.000000e+00> : vector<8xf32>
    %149 = vector.multi_reduction <add>, %148, %cst_34 [1] : vector<8x8xf32> to vector<8xf32>
    %150 = vector.shape_cast %149 : vector<8xf32> to vector<8x1xf32>
    %151 = math.log %144 : vector<8x1xf32>
    %152 = arith.mulf %150, %151 : vector<8x1xf32>
    %153 = arith.mulf %148, %141 : vector<8x8xf32>
    %cst_35 = arith.constant dense<0.000000e+00> : vector<8xf32>
    %154 = vector.multi_reduction <add>, %153, %cst_35 [1] : vector<8x8xf32> to vector<8xf32>
    %155 = vector.shape_cast %154 : vector<8xf32> to vector<8x1xf32>
    %156 = arith.subf %152, %155 : vector<8x1xf32>
    %157 = arith.addf %126, %156 : vector<8x1xf32>
    %158 = vector.extract_strided_slice %14 {offsets = [0, 3], sizes = [8, 1], strides = [1, 1]} : vector<8x5xf32> to vector<8x1xf32>
    %159 = vector.extract_strided_slice %13 {offsets = [3, 0], sizes = [1, 1], strides = [1, 1]} : vector<5x1xf32> to vector<1x1xf32>
    %160 = vector.broadcast %159 : vector<1x1xf32> to vector<8x1xf32>
    %161 = arith.mulf %158, %160 : vector<8x1xf32>
    %162 = vector.extract_strided_slice %17 {offsets = [3, 0], sizes = [1, 8], strides = [1, 1]} : vector<5x8xf32> to vector<1x8xf32>
    %163 = vector.broadcast %161 : vector<8x1xf32> to vector<8x8xf32>
    %164 = vector.broadcast %162 : vector<1x8xf32> to vector<8x8xf32>
    %165 = arith.addf %163, %164 : vector<8x8xf32>
    %166 = arith.mulf %165, %27 : vector<8x8xf32>
    %cst_36 = arith.constant -1.000000e+30 : f32
    %167 = vector.broadcast %cst_36 : f32 to vector<8x8xf32>
    %168 = arith.select %46, %166, %167 : vector<8x8xi1>, vector<8x8xf32>
    %cst_37 = arith.constant dense<0xFF800000> : vector<8xf32>
    %169 = vector.multi_reduction <maximumf>, %168, %cst_37 [1] : vector<8x8xf32> to vector<8xf32>
    %170 = vector.shape_cast %169 : vector<8xf32> to vector<8x1xf32>
    %171 = vector.broadcast %170 : vector<8x1xf32> to vector<8x8xf32>
    %172 = arith.subf %168, %171 : vector<8x8xf32>
    %173 = math.exp %172 : vector<8x8xf32>
    %cst_38 = arith.constant dense<0.000000e+00> : vector<8xf32>
    %174 = vector.multi_reduction <add>, %173, %cst_38 [1] : vector<8x8xf32> to vector<8xf32>
    %175 = vector.shape_cast %174 : vector<8xf32> to vector<8x1xf32>
    %c3_i32 = arith.constant 3 : i32
    %176 = vector.broadcast %c3_i32 : i32 to vector<8x8xi32>
    %177 = arith.cmpi eq, %63, %176 : vector<8x8xi32>
    %178 = arith.extui %177 : vector<8x8xi1> to vector<8x8xi32>
    %179 = arith.sitofp %178 : vector<8x8xi32> to vector<8x8xf32>
    %cst_39 = arith.constant dense<0.000000e+00> : vector<8xf32>
    %180 = vector.multi_reduction <add>, %179, %cst_39 [1] : vector<8x8xf32> to vector<8xf32>
    %181 = vector.shape_cast %180 : vector<8xf32> to vector<8x1xf32>
    %182 = math.log %175 : vector<8x1xf32>
    %183 = arith.mulf %181, %182 : vector<8x1xf32>
    %184 = arith.mulf %179, %172 : vector<8x8xf32>
    %cst_40 = arith.constant dense<0.000000e+00> : vector<8xf32>
    %185 = vector.multi_reduction <add>, %184, %cst_40 [1] : vector<8x8xf32> to vector<8xf32>
    %186 = vector.shape_cast %185 : vector<8xf32> to vector<8x1xf32>
    %187 = arith.subf %183, %186 : vector<8x1xf32>
    %188 = arith.addf %157, %187 : vector<8x1xf32>
    %189 = vector.extract_strided_slice %14 {offsets = [0, 4], sizes = [8, 1], strides = [1, 1]} : vector<8x5xf32> to vector<8x1xf32>
    %190 = vector.extract_strided_slice %13 {offsets = [4, 0], sizes = [1, 1], strides = [1, 1]} : vector<5x1xf32> to vector<1x1xf32>
    %191 = vector.broadcast %190 : vector<1x1xf32> to vector<8x1xf32>
    %192 = arith.mulf %189, %191 : vector<8x1xf32>
    %193 = vector.extract_strided_slice %17 {offsets = [4, 0], sizes = [1, 8], strides = [1, 1]} : vector<5x8xf32> to vector<1x8xf32>
    %194 = vector.broadcast %192 : vector<8x1xf32> to vector<8x8xf32>
    %195 = vector.broadcast %193 : vector<1x8xf32> to vector<8x8xf32>
    %196 = arith.addf %194, %195 : vector<8x8xf32>
    %197 = arith.mulf %196, %27 : vector<8x8xf32>
    %cst_41 = arith.constant -1.000000e+30 : f32
    %198 = vector.broadcast %cst_41 : f32 to vector<8x8xf32>
    %199 = arith.select %46, %197, %198 : vector<8x8xi1>, vector<8x8xf32>
    %cst_42 = arith.constant dense<0xFF800000> : vector<8xf32>
    %200 = vector.multi_reduction <maximumf>, %199, %cst_42 [1] : vector<8x8xf32> to vector<8xf32>
    %201 = vector.shape_cast %200 : vector<8xf32> to vector<8x1xf32>
    %202 = vector.broadcast %201 : vector<8x1xf32> to vector<8x8xf32>
    %203 = arith.subf %199, %202 : vector<8x8xf32>
    %204 = math.exp %203 : vector<8x8xf32>
    %cst_43 = arith.constant dense<0.000000e+00> : vector<8xf32>
    %205 = vector.multi_reduction <add>, %204, %cst_43 [1] : vector<8x8xf32> to vector<8xf32>
    %206 = vector.shape_cast %205 : vector<8xf32> to vector<8x1xf32>
    %c4_i32 = arith.constant 4 : i32
    %207 = vector.broadcast %c4_i32 : i32 to vector<8x8xi32>
    %208 = arith.cmpi eq, %63, %207 : vector<8x8xi32>
    %209 = arith.extui %208 : vector<8x8xi1> to vector<8x8xi32>
    %210 = arith.sitofp %209 : vector<8x8xi32> to vector<8x8xf32>
    %cst_44 = arith.constant dense<0.000000e+00> : vector<8xf32>
    %211 = vector.multi_reduction <add>, %210, %cst_44 [1] : vector<8x8xf32> to vector<8xf32>
    %212 = vector.shape_cast %211 : vector<8xf32> to vector<8x1xf32>
    %213 = math.log %206 : vector<8x1xf32>
    %214 = arith.mulf %212, %213 : vector<8x1xf32>
    %215 = arith.mulf %210, %203 : vector<8x8xf32>
    %cst_45 = arith.constant dense<0.000000e+00> : vector<8xf32>
    %216 = vector.multi_reduction <add>, %215, %cst_45 [1] : vector<8x8xf32> to vector<8xf32>
    %217 = vector.shape_cast %216 : vector<8xf32> to vector<8x1xf32>
    %218 = arith.subf %214, %217 : vector<8x1xf32>
    %219 = arith.addf %188, %218 : vector<8x1xf32>
    %220 = vector.shape_cast %219 : vector<8x1xf32> to vector<1x8x1xf32>
    %cst_46 = arith.constant dense<0.000000e+00> : vector<1xf32>
    %221 = vector.multi_reduction <add>, %220, %cst_46 [1, 2] : vector<1x8x1xf32> to vector<1xf32>
    %222 = vector.shape_cast %221 : vector<1xf32> to vector<1x1x1xf32>
    %223 = vector.extract %222[0, 0, 0] : f32 from vector<1x1x1xf32>
    %c0_i32_47 = arith.constant 0 : i32
    %224 = arith.cmpi eq, %arg0, %c0_i32_47 : i32
    %225 = arith.extui %224 : i1 to i32
    %c0_i32_48 = arith.constant 0 : i32
    %226 = arith.cmpi ne, %225, %c0_i32_48 : i32
    scf.if %226 {
      %cst_53 = arith.constant 0.000000e+00 : f32
      %c0_54 = arith.constant 0 : index
      %233 = memref.load %arg8[%c0_54] : memref<1xf32, #tpu.memory_space<smem>>
      memref.store %cst_53, %arg8[%c0_54] : memref<1xf32, #tpu.memory_space<smem>>
    } else {
    }
    %c0_49 = arith.constant 0 : index
    %227 = memref.load %arg8[%c0_49] : memref<1xf32, #tpu.memory_space<smem>>
    %228 = arith.addf %227, %223 : f32
    %c0_50 = arith.constant 0 : index
    %229 = memref.load %arg8[%c0_50] : memref<1xf32, #tpu.memory_space<smem>>
    memref.store %228, %arg8[%c0_50] : memref<1xf32, #tpu.memory_space<smem>>
    %c0_i32_51 = arith.constant 0 : i32
    %230 = arith.cmpi eq, %arg0, %c0_i32_51 : i32
    %231 = arith.extui %230 : i1 to i32
    %c0_i32_52 = arith.constant 0 : i32
    %232 = arith.cmpi ne, %231, %c0_i32_52 : i32
    scf.if %232 {
      %c0_53 = arith.constant 0 : index
      %233 = memref.load %arg8[%c0_53] : memref<1xf32, #tpu.memory_space<smem>>
      %cst_54 = arith.constant 1.000000e-01 : f32
      %234 = arith.mulf %233, %cst_54 : f32
      %c0_55 = arith.constant 0 : index
      %c0_56 = arith.constant 0 : index
      %235 = memref.load %arg7[%c0_55, %c0_56] : memref<1x1xf32, #tpu.memory_space<smem>>
      memref.store %234, %arg7[%c0_55, %c0_56] : memref<1x1xf32, #tpu.memory_space<smem>>
    } else {
    }
    return
  }
  func.func @transform_0(%arg0: i32) -> (i32, i32) {
    %c0_i32 = arith.constant 0 : i32
    %c0_i32_0 = arith.constant 0 : i32
    return %arg0, %c0_i32 : i32, i32
  }
  func.func @transform_1(%arg0: i32) -> (i32, i32) {
    %c0_i32 = arith.constant 0 : i32
    %c0_i32_0 = arith.constant 0 : i32
    return %arg0, %c0_i32 : i32, i32
  }
  func.func @transform_2(%arg0: i32) -> (i32, i32) {
    %c0_i32 = arith.constant 0 : i32
    %c0_i32_0 = arith.constant 0 : i32
    %c0_i32_1 = arith.constant 0 : i32
    return %c0_i32, %c0_i32_0 : i32, i32
  }
  func.func @transform_3(%arg0: i32) -> (i32, i32) {
    %c0_i32 = arith.constant 0 : i32
    %c0_i32_0 = arith.constant 0 : i32
    %c0_i32_1 = arith.constant 0 : i32
    return %c0_i32, %c0_i32_0 : i32, i32
  }
  func.func @transform_4(%arg0: i32) -> (i32, i32) {
    %c0_i32 = arith.constant 0 : i32
    %c0_i32_0 = arith.constant 0 : i32
    %c0_i32_1 = arith.constant 0 : i32
    return %c0_i32, %c0_i32_0 : i32, i32
  }
  func.func @transform_5(%arg0: i32) -> (i32, i32) {
    %c0_i32 = arith.constant 0 : i32
    %c0_i32_0 = arith.constant 0 : i32
    %c0_i32_1 = arith.constant 0 : i32
    return %c0_i32, %c0_i32_0 : i32, i32
  }
  func.func @transform_6(%arg0: i32) -> (i32, i32) {
    %c0_i32 = arith.constant 0 : i32
    %c0_i32_0 = arith.constant 0 : i32
    %c0_i32_1 = arith.constant 0 : i32
    return %c0_i32, %c0_i32_0 : i32, i32
  }
}

</mosaic_0001>

<llo_original>
// kernel: tpu_custom_call.1
$region0: #{tpu_custom_call.1}
  #allocation0 [shape = 'u32[]', space=smem, size = 0x4, offset = 0x4, fixed_abs, tag = 'smem constant byte address 0x4 - core index']
  #allocation1 [shape = 'u32[72,128]{1,0:T(1,128)}', space=vmem, size = 0x9000, scoped, tag = 'internal scratch']
  #allocation2 [shape = 'f32[1]{0:T(128)}', space=smem, size = 0x200, scoped, tag = 'scratch operand']
  %s0 = inlined_call_operand.vmem [shape: f32[8,32], index: 0, kind: input, shape index: {}]
  %s1 = inlined_call_operand.vmem [shape: f32[8,2], index: 1, kind: input, shape index: {}]
  %s2 = inlined_call_operand.vmem [shape: f32[32,8], index: 2, kind: input, shape index: {}]
  %s3 = inlined_call_operand.vmem [shape: f32[2,8], index: 3, kind: input, shape index: {}]
  %s4 = inlined_call_operand.vmem [shape: f32[5,32], index: 4, kind: input, shape index: {}]
  %s5 = inlined_call_operand.vmem [shape: f32[5,32], index: 5, kind: input, shape index: {}]
  %s6 = inlined_call_operand.hbm [shape: f32[1,1], index: 6, kind: output, shape index: {}]
  %s7 = sld [smem:[#allocation0]]
  $region42: #{tpu_custom_call.1} parent=0
    _
  %s9 = ssub.s32 1, %s7
  %s10 = scalar_select 0, %s9, %s7
  $region1: #{tpu_custom_call.1} parent=0
    #allocation3 [shape = 'u8[512]{0}', space=smem, size = 0x200, scoped, tag = 'output window, operand 0, single buffered']
    #allocation4 [shape = 's32[1]{0}', space=sflag, size = 0x4, scoped, tag = 'scoped memory for tpu_custom_call.1']
    %11 = vsyncpa [#allocation4], 0
    // Predicated region
    $region2: #{tpu_custom_call.1} parent=1 // pred_check
      _
    $region3: #{tpu_custom_call.1} parent=1 // pred_check_branch
      %13 = sbr.rel (0) target = $region5
    $region4: #{tpu_custom_call.1} parent=1 // pred_region
      _
    $region5: #{tpu_custom_call.1} parent=1 // pred_fallthru
      _
    // Predicated region
    $region6: #{tpu_custom_call.1} parent=1 // pred_check
      _
    $region7: #{tpu_custom_call.1} parent=1 // pred_check_branch
      %15 = sbr.rel (0) target = $region9
    $region8: #{tpu_custom_call.1} parent=1 // pred_region
      _
    $region9: #{tpu_custom_call.1} parent=1 // pred_fallthru
      _
    // Predicated region
    $region10: #{tpu_custom_call.1} parent=1 // pred_check
      _
    $region11: #{tpu_custom_call.1} parent=1 // pred_check_branch
      %17 = sbr.rel (0) target = $region13
    $region12: #{tpu_custom_call.1} parent=1 // pred_region
      _
    $region13: #{tpu_custom_call.1} parent=1 // pred_fallthru
      _
    // Predicated region
    $region14: #{tpu_custom_call.1} parent=1 // pred_check
      _
    $region15: #{tpu_custom_call.1} parent=1 // pred_check_branch
      %19 = sbr.rel (0) target = $region17
    $region16: #{tpu_custom_call.1} parent=1 // pred_region
      _
    $region17: #{tpu_custom_call.1} parent=1 // pred_fallthru
      _
    // Predicated region
    $region18: #{tpu_custom_call.1} parent=1 // pred_check
      _
    $region19: #{tpu_custom_call.1} parent=1 // pred_check_branch
      %21 = sbr.rel (0) target = $region21
    $region20: #{tpu_custom_call.1} parent=1 // pred_region
      _
    $region21: #{tpu_custom_call.1} parent=1 // pred_fallthru
      _
    // Predicated region
    $region22: #{tpu_custom_call.1} parent=1 // pred_check
      _
    $region23: #{tpu_custom_call.1} parent=1 // pred_check_branch
      %23 = sbr.rel (0) target = $region25
    $region24: #{tpu_custom_call.1} parent=1 // pred_region
      _
    $region25: #{tpu_custom_call.1} parent=1 // pred_fallthru
      _
    %v24 = vld [vmem:[%s0] sm:$0xff]
    %v25 = vld [vmem:[%s1] sm:$0xff]
    %v26 = vld [vmem:[%s2] sm:$0xff]
    %v27 = vld [vmem:[%s2 + $0x8] sm:$0xff]
    %v28 = vld [vmem:[%s2 + $0x10] sm:$0xff]
    %v29 = vld [vmem:[%s2 + $0x18] sm:$0xff]
    %v30 = vld [vmem:[%s3] sm:$0x3]
    %v31 = vld [vmem:[%s4] sm:$0x1f]
    %v32 = vld [vmem:[%s5] sm:$0x1f]
    %v33 = vmul.f32 %v31, %v31
    %vm34 = vcmask 258048
    %v35 = vsel %vm34, %v33, 0.0
    %36 = vadd.xlane.f32.xlu0 %v35
    %v37 = vpop.xlane.xlu0 %36
    %v38 = vmul.f32 %v32, %v32
    %v39 = vsel %vm34, %v38, 0.0
    %40 = vadd.xlane.f32.xlu0 %v39
    %v41 = vpop.xlane.xlu0 %40
    %v42 = vadd.f32 %v37, %v41
    %v43 = vrsqrt.pop %v42
    %v44 = vmul.f32 %v43, %v42
    %v45 = vmul.f32 %v44, %v43
    %v46 = vmul.f32 0.5, %v45
    %v47 = vsub.f32 1.5, %v46
    %v48 = vmul.f32 %v43, %v47
    %vm49 = vweird.f32 %v42
    %vm50 = vweird.f32 %v43
    %vm51 = vmor %vm49, %vm50
    %v52 = vsel %vm51, %v43, %v48
    %vm53 = vcmask 261120
    %v55 = vsel %vm53, %v24, 0
    %v58 = vsel %vm53, %v31, 0
    %60 = vmatpush.xpose.msra.mxu0 0.0
    %61 = vmatpush.xpose.msra.mxu0 0.0
    %62 = vmatpush.xpose.msra.mxu0 0.0
    %63 = vmatpush.xpose.msra.mxu0 0.0
    %64 = vmatpush.xpose.msra.mxu0 0.0
    %65 = vmatpush.xpose.msra.mxu0 0.0
    %66 = vmatpush.xpose.msra.mxu0 0.0
    %67 = vmatpush.xpose.msra.mxu0 0.0
    %68 = vmatpush.xpose.msra.mxu0 0.0
    %69 = vmatpush.xpose.msra.mxu0 0.0
    %70 = vmatpush.xpose.msra.mxu0 0.0
    %71 = vmatpush.xpose.msra.mxu0 0.0
    %72 = vmatpush.xpose.msra.mxu0 0.0
    %73 = vmatpush.xpose.msra.mxu0 0.0
    %74 = vmatpush.xpose.msra.mxu0 0.0
    %75 = vmatpush.xpose.msra.mxu0 %v58
    %76 = vmatmul.f32.gmra.mxu0 %v55
    %v77 = vpop.f32.mrf.mxu0
    %v78 = vadd.f32 0.0, %v77
    %79 = vdwg.mxu0
    %v81 = vsel %vm53, %v32, 0
    %83 = vmatpush.msra.mxu0 0.0
    %84 = vmatpush.msra.mxu0 0.0
    %85 = vmatpush.msra.mxu0 0.0
    %86 = vmatpush.msra.mxu0 0.0
    %87 = vmatpush.msra.mxu0 0.0
    %88 = vmatpush.msra.mxu0 0.0
    %89 = vmatpush.msra.mxu0 0.0
    %90 = vmatpush.msra.mxu0 0.0
    %91 = vmatpush.msra.mxu0 0.0
    %92 = vmatpush.msra.mxu0 0.0
    %93 = vmatpush.msra.mxu0 0.0
    %94 = vmatpush.msra.mxu0 0.0
    %95 = vmatpush.msra.mxu0 %v29
    %96 = vmatpush.msra.mxu0 %v28
    %97 = vmatpush.msra.mxu0 %v27
    %98 = vmatpush.msra.mxu0 %v26
    %99 = vmatmul.f32.gmra.mxu0 %v81
    %v100 = vpop.f32.mrf.mxu0
    %v101 = vadd.f32 0.0, %v100
    %102 = vdwg.mxu0
    %v103 = vmul.f32 %v101, %v52
    %v104 = vmul.f32 %v24, %v24
    %v105 = vsel %vm53, %v104, 0.0
    %106 = vadd.xlane.f32.xlu0 %v105
    %v107 = vpop.xlane.xlu0 %106
    %v108 = vmul.f32 %v26, %v26
    %v109 = vmul.f32 %v27, %v27
    %v110 = vmul.f32 %v28, %v28
    %v111 = vmul.f32 %v29, %v29
    %vm112 = vcmask 64512
    %v113 = vsel %vm112, %v108, 0.0
    %v114 = vsel %vm112, %v109, 0.0
    %v115 = vadd.f32 %v113, %v114
    %v116 = vsel %vm112, %v110, 0.0
    %v117 = vadd.f32 %v115, %v116
    %v118 = vsel %vm112, %v111, 0.0
    %v119 = vadd.f32 %v117, %v118
    %v120 = vrot.slane %v119, 4
    %v121 = vadd.f32 %v119, %v120
    %v122 = vrot.slane %v121, 2
    %v123 = vadd.f32 %v121, %v122
    %v124 = vrot.slane %v123, 1
    %v125 = vadd.f32 %v123, %v124
    %v126 = vadd.f32 %v107, %v125
    %v127 = vrsqrt.pop %v126
    %v128 = vmul.f32 %v127, %v126
    %v129 = vmul.f32 %v128, %v127
    %v130 = vmul.f32 0.5, %v129
    %v131 = vsub.f32 1.5, %v130
    %v132 = vmul.f32 %v127, %v131
    %vm133 = vweird.f32 %v126
    %vm134 = vweird.f32 %v127
    %vm135 = vmor %vm133, %vm134
    %v136 = vsel %vm135, %v127, %v132
    %138 = vset.pattern.permute.xlu0 0
    %139 = vperm.xlu0 %138, %v25
    %v140 = vpop.permute.xlu0 %139
    %v142 = vperm.slane %v30, 0
    %v143 = vsub.f32 %v140, %v142
    %v144 = vand.u32 2147483647, %v143
    %145 = vset.pattern.permute.xlu0 1
    %146 = vperm.xlu0 %145, %v25
    %v147 = vpop.permute.xlu0 %146
    %v149 = vperm.slane %v30, 1
    %v150 = vsub.f32 %v147, %v149
    %v151 = vand.u32 2147483647, %v150
    %v152 = vadd.f32 %v144, %v151
    %v153 = vlaneseq
    %v154 = vshrl.u32 %v153, 7
    %s155 = smul.u32 0, 8
    %v156 = vstv %s155
    %v157 = vadd.s32 %v154, %v156
    %v158 = vlaneseq
    %v159 = vand.u32 %v158, 127
    %vm160 = vcmp.ne.s32.totalorder %v157, %v159
    %vm161 = vcmp.ge.f32.partialorder %v152, 0.1
    %v162 = vsel %vm161, 1, 0
    %vm163 = vcmp.ge.f32.partialorder %v152, 0.2
    %v164 = vsel %vm163, 1, 0
    %v165 = vadd.s32 %v162, %v164
    %vm166 = vcmp.ge.f32.partialorder %v152, 0.3
    %v167 = vsel %vm166, 1, 0
    %v168 = vadd.s32 %v165, %v167
    %vm169 = vcmp.ge.f32.partialorder %v152, 0.5
    %v170 = vsel %vm169, 1, 0
    %v171 = vadd.s32 %v168, %v170
    %v172 = vsel %vm160, %v171, 4294967295
    %v173 = vperm.slane %v52, 0
    %v174 = vmul.f32 %v78, %v173
    %176 = vset.pattern.permute.xlu0 0
    %177 = vperm.xlu0 %176, %v174
    %v178 = vpop.permute.xlu0 %177
    %v180 = vperm.slane %v103, 0
    %v181 = vadd.f32 %v178, %v180
    %v182 = vmul.f32 %v181, %v136
    %v183 = vsel %vm160, %v182, -1e+30
    %v184 = vsel %vm112, %v183, -inf
    %185 = vmax.xlane.f32.xlu0 %v184
    %v186 = vpop.xlane.xlu0 %185
    %v187 = vsub.f32 %v183, %v186
    %v188 = vmul.f32 %v187, 1.442695
    %v189 = vpow.pop %v188
    %v190 = vsel %vm112, %v189, 0.0
    %191 = vadd.xlane.f32.xlu0 %v190
    %v192 = vpop.xlane.xlu0 %191
    %vm193 = vcmp.eq.s32.totalorder %v172, 0
    %v194 = vsel %vm193, 1, 0
    %v195 = vcvt.s32.f32 %v194
    %v196 = vsel %vm112, %v195, 0.0
    %197 = vadd.xlane.f32.xlu0 %v196
    %v198 = vpop.xlane.xlu0 %197
    %v199 = vlog2.pop %v192
    %v200 = vmul.f32 %v199, 0.6931472
    %v201 = vmul.f32 %v198, %v200
    %v202 = vmul.f32 %v195, %v187
    %v203 = vsel %vm112, %v202, 0.0
    %204 = vadd.xlane.f32.xlu0 %v203
    %v205 = vpop.xlane.xlu0 %204
    %v206 = vsub.f32 %v201, %v205
    %v207 = vadd.f32 %v206, 0.0
    %v208 = vperm.slane %v52, 1
    %v209 = vmul.f32 %v78, %v208
    %211 = vset.pattern.permute.xlu0 1
    %212 = vperm.xlu0 %211, %v209
    %v213 = vpop.permute.xlu0 %212
    %v215 = vperm.slane %v103, 1
    %v216 = vadd.f32 %v213, %v215
    %v217 = vmul.f32 %v216, %v136
    %v218 = vsel %vm160, %v217, -1e+30
    %v219 = vsel %vm112, %v218, -inf
    %220 = vmax.xlane.f32.xlu0 %v219
    %v221 = vpop.xlane.xlu0 %220
    %v222 = vsub.f32 %v218, %v221
    %v223 = vmul.f32 %v222, 1.442695
    %v224 = vpow.pop %v223
    %v225 = vsel %vm112, %v224, 0.0
    %226 = vadd.xlane.f32.xlu0 %v225
    %v227 = vpop.xlane.xlu0 %226
    %vm228 = vcmp.eq.s32.totalorder %v172, 1
    %v229 = vsel %vm228, 1, 0
    %v230 = vcvt.s32.f32 %v229
    %v231 = vsel %vm112, %v230, 0.0
    %232 = vadd.xlane.f32.xlu0 %v231
    %v233 = vpop.xlane.xlu0 %232
    %v234 = vlog2.pop %v227
    %v235 = vmul.f32 %v234, 0.6931472
    %v236 = vmul.f32 %v233, %v235
    %v237 = vmul.f32 %v230, %v222
    %v238 = vsel %vm112, %v237, 0.0
    %239 = vadd.xlane.f32.xlu0 %v238
    %v240 = vpop.xlane.xlu0 %239
    %v241 = vsub.f32 %v236, %v240
    %v242 = vadd.f32 %v207, %v241
    %v243 = vperm.slane %v52, 2
    %v244 = vmul.f32 %v78, %v243
    %246 = vset.pattern.permute.xlu0 2
    %247 = vperm.xlu0 %246, %v244
    %v248 = vpop.permute.xlu0 %247
    %v250 = vperm.slane %v103, 2
    %v251 = vadd.f32 %v248, %v250
    %v252 = vmul.f32 %v251, %v136
    %v253 = vsel %vm160, %v252, -1e+30
    %v254 = vsel %vm112, %v253, -inf
    %255 = vmax.xlane.f32.xlu0 %v254
    %v256 = vpop.xlane.xlu0 %255
    %v257 = vsub.f32 %v253, %v256
    %v258 = vmul.f32 %v257, 1.442695
    %v259 = vpow.pop %v258
    %v260 = vsel %vm112, %v259, 0.0
    %261 = vadd.xlane.f32.xlu0 %v260
    %v262 = vpop.xlane.xlu0 %261
    %vm263 = vcmp.eq.s32.totalorder %v172, 2
    %v264 = vsel %vm263, 1, 0
    %v265 = vcvt.s32.f32 %v264
    %v266 = vsel %vm112, %v265, 0.0
    %267 = vadd.xlane.f32.xlu0 %v266
    %v268 = vpop.xlane.xlu0 %267
    %v269 = vlog2.pop %v262
    %v270 = vmul.f32 %v269, 0.6931472
    %v271 = vmul.f32 %v268, %v270
    %v272 = vmul.f32 %v265, %v257
    %v273 = vsel %vm112, %v272, 0.0
    %274 = vadd.xlane.f32.xlu0 %v273
    %v275 = vpop.xlane.xlu0 %274
    %v276 = vsub.f32 %v271, %v275
    %v277 = vadd.f32 %v242, %v276
    %v278 = vperm.slane %v52, 3
    %v279 = vmul.f32 %v78, %v278
    %281 = vset.pattern.permute.xlu0 3
    %282 = vperm.xlu0 %281, %v279
    %v283 = vpop.permute.xlu0 %282
    %v285 = vperm.slane %v103, 3
    %v286 = vadd.f32 %v283, %v285
    %v287 = vmul.f32 %v286, %v136
    %v288 = vsel %vm160, %v287, -1e+30
    %v289 = vsel %vm112, %v288, -inf
    %290 = vmax.xlane.f32.xlu0 %v289
    %v291 = vpop.xlane.xlu0 %290
    %v292 = vsub.f32 %v288, %v291
    %v293 = vmul.f32 %v292, 1.442695
    %v294 = vpow.pop %v293
    %v295 = vsel %vm112, %v294, 0.0
    %296 = vadd.xlane.f32.xlu0 %v295
    %v297 = vpop.xlane.xlu0 %296
    %vm298 = vcmp.eq.s32.totalorder %v172, 3
    %v299 = vsel %vm298, 1, 0
    %v300 = vcvt.s32.f32 %v299
    %v301 = vsel %vm112, %v300, 0.0
    %302 = vadd.xlane.f32.xlu0 %v301
    %v303 = vpop.xlane.xlu0 %302
    %v304 = vlog2.pop %v297
    %v305 = vmul.f32 %v304, 0.6931472
    %v306 = vmul.f32 %v303, %v305
    %v307 = vmul.f32 %v300, %v292
    %v308 = vsel %vm112, %v307, 0.0
    %309 = vadd.xlane.f32.xlu0 %v308
    %v310 = vpop.xlane.xlu0 %309
    %v311 = vsub.f32 %v306, %v310
    %v312 = vadd.f32 %v277, %v311
    %v313 = vperm.slane %v52, 4
    %v314 = vmul.f32 %v78, %v313
    %316 = vset.pattern.permute.xlu0 4
    %317 = vperm.xlu0 %316, %v314
    %v318 = vpop.permute.xlu0 %317
    %v320 = vperm.slane %v103, 4
    %v321 = vadd.f32 %v318, %v320
    %v322 = vmul.f32 %v321, %v136
    %v323 = vsel %vm160, %v322, -1e+30
    %v324 = vsel %vm112, %v323, -inf
    %325 = vmax.xlane.f32.xlu0 %v324
    %v326 = vpop.xlane.xlu0 %325
    %v327 = vsub.f32 %v323, %v326
    %v328 = vmul.f32 %v327, 1.442695
    %v329 = vpow.pop %v328
    %v330 = vsel %vm112, %v329, 0.0
    %331 = vadd.xlane.f32.xlu0 %v330
    %v332 = vpop.xlane.xlu0 %331
    %vm333 = vcmp.eq.s32.totalorder %v172, 4
    %v334 = vsel %vm333, 1, 0
    %v335 = vcvt.s32.f32 %v334
    %v336 = vsel %vm112, %v335, 0.0
    %337 = vadd.xlane.f32.xlu0 %v336
    %v338 = vpop.xlane.xlu0 %337
    %v339 = vlog2.pop %v332
    %v340 = vmul.f32 %v339, 0.6931472
    %v341 = vmul.f32 %v338, %v340
    %v342 = vmul.f32 %v335, %v327
    %v343 = vsel %vm112, %v342, 0.0
    %344 = vadd.xlane.f32.xlu0 %v343
    %v345 = vpop.xlane.xlu0 %344
    %v346 = vsub.f32 %v341, %v345
    %v347 = vadd.f32 %v312, %v346
    %vm348 = vcmask 7168
    %v349 = vsel %vm348, %v347, 0.0
    %350 = vadd.xlane.f32.xlu0 %v349
    %v351 = vpop.xlane.xlu0 %350
    %v352 = vrot.slane %v351, 4
    %v353 = vadd.f32 %v351, %v352
    %v354 = vrot.slane %v353, 2
    %v355 = vadd.f32 %v353, %v354
    %v356 = vrot.slane %v355, 1
    %v357 = vadd.f32 %v355, %v356
    %s358 = vtos %v357
    %p359 = scmp.eq.s32.totalorder 0, 0
    // Predicated region
    $region26: #{tpu_custom_call.1} parent=1 // pred_check
      %p360 = pneg %p359
    $region27: #{tpu_custom_call.1} parent=1 // pred_check_branch
      %362 = sbr.rel (%p360) target = $region29
    $region28: #{tpu_custom_call.1} parent=1 // pred_region
      %s363 = scalar_lea.smem [#allocation2], 0
      %364 = sst [smem:[%s363]] 0.0
    $region29: #{tpu_custom_call.1} parent=1 // pred_fallthru
      _
    %s365 = sld [smem:[#allocation2]]
    %s366 = sadd.f32 %s365, %s358
    %s367 = scalar_lea.smem [#allocation2], 0
    %368 = sst [smem:[%s367]] %s366
    // Predicated region
    $region30: #{tpu_custom_call.1} parent=1 // pred_check
      %p369 = pneg %p359
    $region31: #{tpu_custom_call.1} parent=1 // pred_check_branch
      %371 = sbr.rel (%p369) target = $region33
    $region32: #{tpu_custom_call.1} parent=1 // pred_region
      %s372 = sld [smem:[#allocation2]]
      %s373 = smul.f32 %s372, 0.1
      %s374 = scalar_lea.smem [#allocation3], 0
      %375 = sst [smem:[%s374]] %s373
    $region33: #{tpu_custom_call.1} parent=1 // pred_fallthru
      _
    // Predicated region
    $region34: #{tpu_custom_call.1} parent=1 // pred_check
      _
    $region35: #{tpu_custom_call.1} parent=1 // pred_check_branch
      %377 = sbr.rel (0) target = $region37
    $region36: #{tpu_custom_call.1} parent=1 // pred_region
      %379 = vsyncadd [#allocation4], 0
      %s381 = sshll.u32 %s6, 4
      %s382 = int_to_ptr.hbm [resolvable:$true] %s381
      %384 = dma.smem_to_hbm [#allocation3], 16, %s382, [#allocation4]
    $region37: #{tpu_custom_call.1} parent=1 // pred_fallthru
      _
    // Predicated region
    $region38: #{tpu_custom_call.1} parent=1 // pred_check
      _
    $region39: #{tpu_custom_call.1} parent=1 // pred_check_branch
      %386 = sbr.rel (0) target = $region41
    $region40: #{tpu_custom_call.1} parent=1 // pred_region
      %388 = dma.done [#allocation4], 16
    $region41: #{tpu_custom_call.1} parent=1 // pred_fallthru
      _
    %389 = sfence
    %390 = vsyncpa [#allocation4], 1

</llo_original>
